<compile_context>
chip_gen: v7x
topology: tpu7x:2x2x1
jax: 0.10.0
libtpu: 0.0.40
codegen_flags: <defaults>
</compile_context>

<pallas_src>
import functools

import jax
import jax.numpy as jnp
from jax.experimental import pallas as pl
from jax.experimental.pallas import tpu as pltpu

LANES = 128
SUBLANES = 8


def _num_tensorcores_per_chip():
    """2 TensorCores on v7x-class chips, 1 on v5e/v6e (and on any failure)."""
    try:
        kind = jax.devices()[0].device_kind.lower()
    except Exception:
        return 1
    return 2 if "7x" in kind else 1


def _nmse_sqrt_kernel(x_ref, t_ref, o_ref, acc_ref, *, scale, defsigma):
    """Accumulates sum((x - t)^2 / (scale*|t| + defsigma)) for one core partition.

    acc_ref : (8, 128) f32 VMEM accumulator; the per-step row-group reduction is
              a chain of vreg-wise VPU adds (no XLU, no large acc load/store).
    o_ref   : (1, 8, 128) output block; written once, on the last reduction step.
    """
    t_idx = pl.program_id(1)

    @pl.when(t_idx == 0)
    def _():
        acc_ref[...] = jnp.zeros_like(acc_ref)

    # Cast right after the load: sub-f32 inputs only pay their native HBM bytes,
    # VPU math stays in f32 on all chips (incl. v5e).
    x = x_ref[...].astype(jnp.float32)
    t = t_ref[...].astype(jnp.float32)
    sigma = scale * jnp.abs(t) + defsigma
    r = x - t

    # EUP reciprocal (separate VLIW slot, ~free) + one Newton-Raphson refinement
    # instead of the multi-op VALU divide; accuracy ~1e-7 relative, well within
    # the 1e-5 tolerance, and keeps the kernel mem-bound on v7x / bf16 inputs.
    if hasattr(pl, "reciprocal"):
        inv = pl.reciprocal(sigma, approx=True)
        inv = inv * (2.0 - sigma * inv)      # Newton step: doubles precision
        v = (r * r) * inv
    else:  # fallback for very old JAX
        v = (r * r) / sigma

    rt = v.shape[0]
    # (row_tile,128) -> (row_tile//8, 8, 128) does not cross (8,128) tile
    # boundaries, so the axis-0 sum lowers to plain VPU adds into a single vreg
    # group accumulator.
    acc_ref[...] += jnp.sum(v.reshape(rt // SUBLANES, SUBLANES, LANES), axis=0)

    @pl.when(t_idx == pl.num_programs(1) - 1)
    def _():
        o_ref[...] = acc_ref[...].reshape(o_ref.shape)


def normalized_mse_sqrt_loss(inp, target, *, size_average=True, scale=0.5,
                             defsigma=0.005):
    assert inp.shape == target.shape
    nelem = inp.size

    # Flatten (no dtype cast here -- cast happens inside the kernel).
    x = jnp.ravel(inp)
    t = jnp.ravel(target)

    # Lane-dense layout: rows of 128 lanes, rounded up to a sublane multiple.
    rows = pl.cdiv(nelem, LANES)
    rows = pl.cdiv(rows, SUBLANES) * SUBLANES

    num_tc = _num_tensorcores_per_chip()
    num_cores = 2 if (num_tc == 2 and rows >= 1024) else 1

    # Big tiles amortize the ~0.35us/grid-step overhead; sized so
    # 2 inputs x 2 buffers x tile + elementwise temporaries fit the *default*
    # scoped VMEM on every chip (16 MiB on v5e, 32 MiB on v6e/v7x).
    max_row_tile = 4096 if num_cores == 2 else 2048

    tiles_per_core = pl.cdiv(pl.cdiv(rows, num_cores), max_row_tile)
    # Balance the tile size over the whole grid: padding is at most a few
    # sublanes (exactly zero for lane/sublane-aligned inputs) instead of a
    # whole extra tile of zero HBM traffic.
    row_tile = pl.cdiv(pl.cdiv(rows, num_cores * tiles_per_core),
                       SUBLANES) * SUBLANES
    padded_rows = num_cores * tiles_per_core * row_tile
    padded = padded_rows * LANES

    # Zero padding is exact: residual = 0 there and sigma = defsigma > 0.
    # TODO(synk): for large non-aligned inputs this jnp.pad is one extra HBM
    # copy; an in-kernel ragged-tail mask would remove it entirely.
    if padded != nelem:
        x = jnp.pad(x, (0, padded - nelem))
        t = jnp.pad(t, (0, padded - nelem))
    x = x.reshape(padded_rows, LANES)
    t = t.reshape(padded_rows, LANES)

    kernel = functools.partial(
        _nmse_sqrt_kernel,
        scale=float(scale),        # Python floats -> jaxpr literals,
        defsigma=float(defsigma),  # not captured array constants.
    )

    tpc = tiles_per_core  # Python int closure for the index maps

    def in_map(p, i):
        return (p * tpc + i, 0)

    if num_cores == 2 and hasattr(pltpu, "CORE_PARALLEL"):
        # Guarantees the per-core split is actually lowered onto both TCs (v7x).
        dim_sems = (pltpu.CORE_PARALLEL, pltpu.ARBITRARY)
    else:
        dim_sems = ("arbitrary", "arbitrary")

    partials = pl.pallas_call(
        kernel,
        out_shape=jax.ShapeDtypeStruct((num_cores, SUBLANES, LANES),
                                       jnp.float32),
        grid_spec=pltpu.PrefetchScalarGridSpec(
            num_scalar_prefetch=0,
            grid=(num_cores, tiles_per_core),
            in_specs=[
                pl.BlockSpec((row_tile, LANES), in_map),
                pl.BlockSpec((row_tile, LANES), in_map),
            ],
            out_specs=pl.BlockSpec((1, SUBLANES, LANES),
                                   lambda p, i: (p, 0, 0)),
            scratch_shapes=[pltpu.VMEM((SUBLANES, LANES), jnp.float32)],
        ),
        compiler_params=pltpu.CompilerParams(dimension_semantics=dim_sems),
    )(x, t)

    # Tiny final cross-lane reduce (num_cores*8*128 f32) + scalar math in XLA.
    total = 0.5 * jnp.sum(partials)
    if size_average:
        total = total / nelem
    return total


def _reference(inp, target, *, size_average=True, scale=0.5, defsigma=0.005):
    sigma = scale * jnp.abs(target) + defsigma
    residual = (inp - target) ** 2
    out = 0.5 * jnp.sum(residual / sigma)
    if size_average:
        out = out / inp.size
    return out


if __name__ == "__main__":
    key = jax.random.PRNGKey(0)
    k1, k2, k3, k4 = jax.random.split(key, 4)

    # NCHW-shaped inputs, as the PyTorch module would typically receive.
    x = jax.random.normal(k1, (2, 4, 16, 16), dtype=jnp.float32)
    t = jax.random.normal(k2, (2, 4, 16, 16), dtype=jnp.float32)

    loss = jax.block_until_ready(
        normalized_mse_sqrt_loss(x, t, size_average=True))
    ref = _reference(x, t, size_average=True)
    assert jnp.allclose(loss, ref, rtol=1e-5, atol=1e-6), (loss, ref)

    # size_average=False path.
    loss2 = jax.block_until_ready(
        normalized_mse_sqrt_loss(x, t, size_average=False))
    ref2 = _reference(x, t, size_average=False)
    assert jnp.allclose(loss2, ref2, rtol=1e-5, atol=1e-4), (loss2, ref2)

    # Non-lane-aligned shape exercises the (minimal) padding path.
    xr = jax.random.normal(k3, (3, 5, 7, 11), dtype=jnp.float32)
    tr = jax.random.normal(k4, (3, 5, 7, 11), dtype=jnp.float32)
    loss3 = jax.block_until_ready(
        normalized_mse_sqrt_loss(xr, tr, size_average=True))
    ref3 = _reference(xr, tr, size_average=True)
    assert jnp.allclose(loss3, ref3, rtol=1e-5, atol=1e-6), (loss3, ref3)

    # bf16 inputs exercise the in-kernel cast path (reference in f32 from the
    # same bf16 values; only summation order / reciprocal differ).
    xb = x.astype(jnp.bfloat16)
    tb = t.astype(jnp.bfloat16)
    loss4 = jax.block_until_ready(normalized_mse_sqrt_loss(xb, tb))
    ref4 = _reference(xb.astype(jnp.float32), tb.astype(jnp.float32))
    assert jnp.allclose(loss4, ref4, rtol=5e-3, atol=1e-4), (loss4, ref4)

    print("KERNEL_OK")
</pallas_src>

<mosaic_0001>
module attributes {stable_mosaic.version = 11 : i64} {
  func.func @_nmse_sqrt_kernel(%arg0: i32, %arg1: i32, %arg2: memref<16x128xf32, #tpu.memory_space<vmem>>, %arg3: memref<16x128xf32, #tpu.memory_space<vmem>>, %arg4: memref<1x8x128xf32, #tpu.memory_space<vmem>>, %arg5: memref<8x128xf32, #tpu.memory_space<vmem>>) attributes {dimension_semantics = [#tpu.dimension_semantics<arbitrary>, #tpu.dimension_semantics<arbitrary>], iteration_bounds = array<i64: 1, 1>, scalar_prefetch = 0 : i64, scratch_operands = 1 : i64, tpu.core_type = #tpu.core_type<tc>, window_params = [{transform_indices = @transform_0, window_bounds = array<i64: 16, 128>}, {transform_indices = @transform_1, window_bounds = array<i64: 16, 128>}, {transform_indices = @transform_2, window_bounds = array<i64: 1, 8, 128>}]} {
    %c0_i32 = arith.constant 0 : i32
    %0 = arith.cmpi eq, %arg1, %c0_i32 : i32
    %1 = arith.extui %0 : i1 to i32
    %c0_i32_0 = arith.constant 0 : i32
    %2 = arith.cmpi ne, %1, %c0_i32_0 : i32
    scf.if %2 {
      %cst_13 = arith.constant 0.000000e+00 : f32
      %26 = vector.broadcast %cst_13 : f32 to vector<8x128xf32>
      %c0_14 = arith.constant 0 : index
      %c0_15 = arith.constant 0 : index
      %27 = vector.load %arg5[%c0_14, %c0_15] : memref<8x128xf32, #tpu.memory_space<vmem>>, vector<8x128xf32>
      tpu.vector_store %arg5[%c0_14, %c0_15], %26 {strides = array<i32>} : memref<8x128xf32, #tpu.memory_space<vmem>>, vector<8x128xf32>,
    } else {
    }
    %c0 = arith.constant 0 : index
    %c0_1 = arith.constant 0 : index
    %3 = vector.load %arg2[%c0, %c0_1] : memref<16x128xf32, #tpu.memory_space<vmem>>, vector<16x128xf32>
    %c0_2 = arith.constant 0 : index
    %c0_3 = arith.constant 0 : index
    %4 = vector.load %arg3[%c0_2, %c0_3] : memref<16x128xf32, #tpu.memory_space<vmem>>, vector<16x128xf32>
    %5 = math.absf %4 : vector<16x128xf32>
    %cst = arith.constant 5.000000e-01 : f32
    %6 = vector.broadcast %cst : f32 to vector<16x128xf32>
    %7 = arith.mulf %6, %5 : vector<16x128xf32>
    %cst_4 = arith.constant 5.000000e-03 : f32
    %8 = vector.broadcast %cst_4 : f32 to vector<16x128xf32>
    %9 = arith.addf %7, %8 : vector<16x128xf32>
    %10 = arith.subf %3, %4 : vector<16x128xf32>
    %11 = tpu.reciprocal %9 {approx = true} : vector<16x128xf32> -> vector<16x128xf32>
    %12 = arith.mulf %9, %11 : vector<16x128xf32>
    %cst_5 = arith.constant 2.000000e+00 : f32
    %13 = vector.broadcast %cst_5 : f32 to vector<16x128xf32>
    %14 = arith.subf %13, %12 : vector<16x128xf32>
    %15 = arith.mulf %11, %14 : vector<16x128xf32>
    %16 = arith.mulf %10, %10 : vector<16x128xf32>
    %17 = arith.mulf %16, %15 : vector<16x128xf32>
    %c0_6 = arith.constant 0 : index
    %c0_7 = arith.constant 0 : index
    %18 = vector.load %arg5[%c0_6, %c0_7] : memref<8x128xf32, #tpu.memory_space<vmem>>, vector<8x128xf32>
    %19 = vector.shape_cast %17 : vector<16x128xf32> to vector<2x8x128xf32>
    %cst_8 = arith.constant dense<0.000000e+00> : vector<8x128xf32>
    %20 = vector.multi_reduction <add>, %19, %cst_8 [0] : vector<2x8x128xf32> to vector<8x128xf32>
    %21 = arith.addf %18, %20 : vector<8x128xf32>
    %c0_9 = arith.constant 0 : index
    %c0_10 = arith.constant 0 : index
    %22 = vector.load %arg5[%c0_9, %c0_10] : memref<8x128xf32, #tpu.memory_space<vmem>>, vector<8x128xf32>
    tpu.vector_store %arg5[%c0_9, %c0_10], %21 {strides = array<i32>} : memref<8x128xf32, #tpu.memory_space<vmem>>, vector<8x128xf32>,
    %c0_i32_11 = arith.constant 0 : i32
    %23 = arith.cmpi eq, %arg1, %c0_i32_11 : i32
    %24 = arith.extui %23 : i1 to i32
    %c0_i32_12 = arith.constant 0 : i32
    %25 = arith.cmpi ne, %24, %c0_i32_12 : i32
    scf.if %25 {
      %c0_13 = arith.constant 0 : index
      %c0_14 = arith.constant 0 : index
      %26 = vector.load %arg5[%c0_13, %c0_14] : memref<8x128xf32, #tpu.memory_space<vmem>>, vector<8x128xf32>
      %27 = vector.shape_cast %26 : vector<8x128xf32> to vector<1x8x128xf32>
      %c0_15 = arith.constant 0 : index
      %c0_16 = arith.constant 0 : index
      %c0_17 = arith.constant 0 : index
      %28 = vector.load %arg4[%c0_15, %c0_16, %c0_17] : memref<1x8x128xf32, #tpu.memory_space<vmem>>, vector<1x8x128xf32>
      tpu.vector_store %arg4[%c0_15, %c0_16, %c0_17], %27 {strides = array<i32>} : memref<1x8x128xf32, #tpu.memory_space<vmem>>, vector<1x8x128xf32>,
    } else {
    }
    return
  }
  func.func @transform_0(%arg0: i32, %arg1: i32) -> (i32, i32) {
    %c1_i32 = arith.constant 1 : i32
    %0 = arith.muli %arg0, %c1_i32 : i32
    %1 = arith.addi %0, %arg1 : i32
    %c0_i32 = arith.constant 0 : i32
    %c0_i32_0 = arith.constant 0 : i32
    return %1, %c0_i32 : i32, i32
  }
  func.func @transform_1(%arg0: i32, %arg1: i32) -> (i32, i32) {
    %c1_i32 = arith.constant 1 : i32
    %0 = arith.muli %arg0, %c1_i32 : i32
    %1 = arith.addi %0, %arg1 : i32
    %c0_i32 = arith.constant 0 : i32
    %c0_i32_0 = arith.constant 0 : i32
    return %1, %c0_i32 : i32, i32
  }
  func.func @transform_2(%arg0: i32, %arg1: i32) -> (i32, i32, i32) {
    %c0_i32 = arith.constant 0 : i32
    %c0_i32_0 = arith.constant 0 : i32
    %c0_i32_1 = arith.constant 0 : i32
    return %arg0, %c0_i32, %c0_i32_0 : i32, i32, i32
  }
}

</mosaic_0001>

<llo_original>
// kernel: tpu_custom_call.1
$region0: #{tpu_custom_call.1}
  #allocation0 [shape = 'u32[]', space=smem, size = 0x4, offset = 0x4, fixed_abs, tag = 'smem constant byte address 0x4 - core index']
  #allocation1 [shape = 'u32[144,128]{1,0:T(1,128)}', space=vmem, size = 0x12000, scoped, tag = 'internal scratch']
  #allocation2 [shape = 'f32[8,128]{1,0:T(8,128)}', space=vmem, size = 0x1000, scoped, tag = 'scratch operand']
  %s0 = inlined_call_operand.hbm [shape: f32[16,128], index: 0, kind: input, shape index: {}]
  %s1 = inlined_call_operand.hbm [shape: f32[16,128], index: 1, kind: input, shape index: {}]
  %s2 = inlined_call_operand.hbm [shape: f32[1,8,128], index: 2, kind: output, shape index: {}]
  %s3 = sld [smem:[#allocation0]]
  $region34: #{tpu_custom_call.1} parent=0
    _
  %s5 = ssub.s32 1, %s3
  %s6 = scalar_select 0, %s5, %s3
  $region1: #{tpu_custom_call.1} parent=0
    #allocation3 [shape = 'u8[8192]{0}', space=vmem, size = 0x2000, scoped, tag = 'input window, operand 0, single buffered']
    #allocation4 [shape = 's32[1]{0}', space=sflag, size = 0x4, scoped, tag = 'scoped memory for tpu_custom_call.1']
    #allocation5 [shape = 's32[1]{0}', space=sflag, size = 0x4, scoped, tag = 'scoped memory for tpu_custom_call.1']
    #allocation6 [shape = 'u8[8192]{0}', space=vmem, size = 0x2000, scoped, tag = 'input window, operand 1, single buffered']
    #allocation7 [shape = 's32[1]{0}', space=sflag, size = 0x4, scoped, tag = 'scoped memory for tpu_custom_call.1']
    #allocation8 [shape = 'u8[4096]{0}', space=vmem, size = 0x1000, scoped, tag = 'output window, operand 0, single buffered']
    %7 = vsyncpa [#allocation4], 0
    %8 = vsyncpa [#allocation7], 0
    %9 = vsyncpa [#allocation5], 0
    // Predicated region
    $region2: #{tpu_custom_call.1} parent=1 // pred_check
      _
    $region3: #{tpu_custom_call.1} parent=1 // pred_check_branch
      %11 = sbr.rel (0) target = $region5
    $region4: #{tpu_custom_call.1} parent=1 // pred_region
      %s12 = sadd.s32 0, 0
      %s13 = smul.u32 2, %s12
      %s15 = ssub.s32 256, 256
      %16 = vsyncadd [#allocation4], %s15
      %s17 = smul.addr %s13, 128
      %s18 = scalar_lea.hbm %s0, %s17
      %s19 = sshll.u32 [#allocation3], 4
      %s20 = int_to_ptr.vmem [resolvable:$true] %s19
      %25 = dma.hbm_to_vmem [thread:$0]  %s18, 256, %s20, [#allocation4], 128, 128, 8
    $region5: #{tpu_custom_call.1} parent=1 // pred_fallthru
      _
    // Predicated region
    $region6: #{tpu_custom_call.1} parent=1 // pred_check
      _
    $region7: #{tpu_custom_call.1} parent=1 // pred_check_branch
      %27 = sbr.rel (0) target = $region9
    $region8: #{tpu_custom_call.1} parent=1 // pred_region
      %s28 = sadd.s32 0, 0
      %s29 = smul.u32 2, %s28
      %s31 = ssub.s32 256, 256
      %32 = vsyncadd [#allocation7], %s31
      %s33 = smul.addr %s29, 128
      %s34 = scalar_lea.hbm %s1, %s33
      %s35 = sshll.u32 [#allocation6], 4
      %s36 = int_to_ptr.vmem [resolvable:$true] %s35
      %41 = dma.hbm_to_vmem [thread:$0]  %s34, 256, %s36, [#allocation7], 128, 128, 8
    $region9: #{tpu_custom_call.1} parent=1 // pred_fallthru
      _
    // Predicated region
    $region10: #{tpu_custom_call.1} parent=1 // pred_check
      _
    $region11: #{tpu_custom_call.1} parent=1 // pred_check_branch
      %43 = sbr.rel (0) target = $region13
    $region12: #{tpu_custom_call.1} parent=1 // pred_region
      %44 = dma.done [#allocation4], 256
    $region13: #{tpu_custom_call.1} parent=1 // pred_fallthru
      _
    // Predicated region
    $region14: #{tpu_custom_call.1} parent=1 // pred_check
      _
    $region15: #{tpu_custom_call.1} parent=1 // pred_check_branch
      %46 = sbr.rel (0) target = $region17
    $region16: #{tpu_custom_call.1} parent=1 // pred_region
      %47 = dma.done [#allocation7], 256
    $region17: #{tpu_custom_call.1} parent=1 // pred_fallthru
      _
    %s48 = sadd.s32 0, 0
    %s49 = smul.u32 2, %s48
    %s50 = sadd.s32 0, 0
    %s51 = smul.u32 2, %s50
    %p52 = scmp.eq.s32.totalorder 0, 0
    // Predicated region
    $region18: #{tpu_custom_call.1} parent=1 // pred_check
      %p53 = pneg %p52
    $region19: #{tpu_custom_call.1} parent=1 // pred_check_branch
      %55 = sbr.rel (%p53) target = $region21
    $region20: #{tpu_custom_call.1} parent=1 // pred_region
      %56 = vst [vmem:[#allocation2] sm:$0xff] 0.0
    $region21: #{tpu_custom_call.1} parent=1 // pred_fallthru
      _
    %v57 = vld [vmem:[#allocation3] sm:$0xff]
    %v58 = vld [vmem:[#allocation3 + $0x8] sm:$0xff]
    %v59 = vld [vmem:[#allocation6] sm:$0xff]
    %v60 = vld [vmem:[#allocation6 + $0x8] sm:$0xff]
    %v61 = vand.u32 2147483647, %v59
    %v62 = vand.u32 2147483647, %v60
    %v63 = vmul.f32 %v61, 0.5
    %v64 = vmul.f32 %v62, 0.5
    %v65 = vadd.f32 %v63, 0.005
    %v66 = vadd.f32 %v64, 0.005
    %v67 = vsub.f32 %v57, %v59
    %v68 = vsub.f32 %v58, %v60
    %v69 = vrcp.pop %v65
    %v70 = vrcp.pop %v66
    %v71 = vmul.f32 %v65, %v69
    %v72 = vmul.f32 %v66, %v70
    %v73 = vsub.f32 2.0, %v71
    %v74 = vsub.f32 2.0, %v72
    %v75 = vmul.f32 %v69, %v73
    %v76 = vmul.f32 %v70, %v74
    %v77 = vmul.f32 %v67, %v67
    %v78 = vmul.f32 %v68, %v68
    %v79 = vmul.f32 %v77, %v75
    %v80 = vmul.f32 %v78, %v76
    %v81 = vld [vmem:[#allocation2] sm:$0xff]
    %v82 = vadd.f32 %v79, %v80
    %v83 = vadd.f32 %v81, %v82
    %84 = vst [vmem:[#allocation2] sm:$0xff] %v83
    // Predicated region
    $region22: #{tpu_custom_call.1} parent=1 // pred_check
      %p85 = pneg %p52
    $region23: #{tpu_custom_call.1} parent=1 // pred_check_branch
      %87 = sbr.rel (%p85) target = $region25
    $region24: #{tpu_custom_call.1} parent=1 // pred_region
      %v88 = vld [vmem:[#allocation2] sm:$0xff]
      %89 = vst [vmem:[#allocation8] sm:$0xff] %v88
    $region25: #{tpu_custom_call.1} parent=1 // pred_fallthru
      _
    // Predicated region
    $region26: #{tpu_custom_call.1} parent=1 // pred_check
      _
    $region27: #{tpu_custom_call.1} parent=1 // pred_check_branch
      %91 = sbr.rel (0) target = $region29
    $region28: #{tpu_custom_call.1} parent=1 // pred_region
      %s93 = ssub.s32 128, 128
      %94 = vsyncadd [#allocation5], %s93
      %s96 = sshll.u32 [#allocation8], 4
      %s97 = int_to_ptr.vmem [resolvable:$true] %s96
      %99 = dma.vmem_to_hbm [thread:$0]  %s97, 128, %s2, [#allocation5]
    $region29: #{tpu_custom_call.1} parent=1 // pred_fallthru
      _
    // Predicated region
    $region30: #{tpu_custom_call.1} parent=1 // pred_check
      _
    $region31: #{tpu_custom_call.1} parent=1 // pred_check_branch
      %101 = sbr.rel (0) target = $region33
    $region32: #{tpu_custom_call.1} parent=1 // pred_region
      %102 = dma.done [#allocation5], 128
    $region33: #{tpu_custom_call.1} parent=1 // pred_fallthru
      _
    %103 = vsyncpa [#allocation4], 1
    %104 = vsyncpa [#allocation7], 1
    %105 = vsyncpa [#allocation5], 1

</llo_original>
